<compile_context>
chip_gen: v7x
topology: tpu7x:2x2x1
jax: 0.10.0
libtpu: 0.0.40
codegen_flags: <defaults>
</compile_context>

<pallas_src>
import math

import jax
import jax.numpy as jnp
from jax.experimental import pallas as pl
from jax.experimental.pallas import tpu as pltpu


def _round_up(x, m):
    return ((x + m - 1) // m) * m


def _pick_tile(padded_dim, align, target):
    """Largest multiple of `align` that divides `padded_dim` and is <= target."""
    best = align
    d = align
    while d <= padded_dim:
        if padded_dim % d == 0 and d <= target:
            best = d
        d += align
    return best


def _vbp_linear_kernel(x_ref, w_ref, b_ref, o_ref):
    # x_ref : (tb, tk)   activation tile (compute dtype)
    # w_ref : (tk, tn)   weight tile, already transposed to (n_in, n_out)
    # b_ref : (1,  tn)   f32 bias row for this N block
    # o_ref : (tb, tn)   f32 output tile; its block index is constant across
    #                    the K axis, so it stays resident in VMEM and doubles
    #                    as the accumulator (no separate scratch needed).
    k = pl.program_id(2)

    @pl.when(k == 0)
    def _():
        o_ref[...] = jnp.zeros_like(o_ref)

    o_ref[...] += jnp.dot(
        x_ref[...], w_ref[...], preferred_element_type=jnp.float32
    )

    @pl.when(k == pl.num_programs(2) - 1)
    def _():
        # Bias added exactly once, on the finalize step.
        o_ref[...] = o_ref[...] + b_ref[...]


def prepare_vbp_linear(mu_w, bias, *, compute_dtype=jnp.bfloat16):
    """One-time weight prep (hoisted out of the per-call forward path).

    Transposes mu_w to (n_in, n_out), zero-pads both dims to multiples of 128,
    casts to the compute dtype, and reshapes/pads the bias to a (1, N_pad) f32
    row.  Call this once per layer (e.g. at init) and reuse the result across
    forward calls; the padded shapes do not depend on the batch size.
    """
    n_out, n_in = mu_w.shape
    k_pad = _round_up(n_in, 128)
    n_pad = _round_up(n_out, 128)

    w = mu_w.T  # (n_in, n_out)
    if (k_pad, n_pad) != (n_in, n_out):
        w = jnp.pad(w, ((0, k_pad - n_in), (0, n_pad - n_out)))
    w = w.astype(compute_dtype)

    b = bias.astype(jnp.float32)
    if n_pad != n_out:
        b = jnp.pad(b, (0, n_pad - n_out))
    b2d = b.reshape(1, n_pad)

    return {"w": w, "b": b2d, "n_in": n_in, "n_out": n_out}


def vbp_linear_forward(data, prepared, *, tb=512, tn=512, tk=1024):
    """Pallas VBPLinear.forward using weights from prepare_vbp_linear.

    tb/tn/tk are *targets*; actual tiles are divisor-aligned to the padded
    problem dims so no work is wasted on padded zeros.
    """
    w_p = prepared["w"]
    b2d = prepared["b"]
    n_in = prepared["n_in"]
    n_out = prepared["n_out"]

    B, d_in = data.shape
    assert d_in == n_in, "in_features mismatch"

    compute_dtype = w_p.dtype
    ci = jnp.dtype(compute_dtype).itemsize
    k_pad, n_pad = w_p.shape

    # Sublane alignment: 16 for sub-32-bit compute dtypes, 8 for f32.
    align_b = 16 if ci < 4 else 8
    b_pad = _round_up(B, align_b)

    # Divisor-aligned tiles (no inflation of the padded problem).
    tb = _pick_tile(b_pad, align_b, tb)
    tk = _pick_tile(k_pad, 128, tk)
    # Megacore heuristic: if the M axis collapses to a single block, try to
    # keep >=2 blocks on the N (parallel) axis so v7x's second core has work.
    tn_target = tn
    if b_pad // tb == 1 and n_pad >= 2 * 128:
        tn_target = min(tn_target, n_pad // 2)
    tn = _pick_tile(n_pad, 128, tn_target)

    # Cast activations to the compute dtype; pad only if actually needed.
    x = data.astype(compute_dtype)
    if (b_pad, k_pad) != (B, n_in):
        x = jnp.pad(x, ((0, b_pad - B), (0, k_pad - n_in)))

    grid = (b_pad // tb, n_pad // tn, k_pad // tk)

    # VMEM footprint: double-buffered x/w/bias/out tiles (out acts as the
    # accumulator).  Capped at 48 MiB to stay under v7x's 64 MiB physical VMEM.
    footprint = (2 * tb * tk * ci + 2 * tk * tn * ci
                 + 2 * tb * tn * 4 + 2 * tn * 4)
    vmem_limit = int(min(48 * 1024 * 1024,
                         max(int(footprint * 1.5), 16 * 1024 * 1024)))

    cost = pl.CostEstimate(
        flops=2 * b_pad * k_pad * n_pad,
        transcendentals=0,
        bytes_accessed=(ci * (b_pad * k_pad + k_pad * n_pad)
                        + 4 * (n_pad + b_pad * n_pad)),
    )

    out_p = pl.pallas_call(
        _vbp_linear_kernel,
        out_shape=jax.ShapeDtypeStruct((b_pad, n_pad), jnp.float32),
        grid=grid,
        in_specs=[
            pl.BlockSpec((tb, tk), lambda i, j, k: (i, k)),   # activations
            pl.BlockSpec((tk, tn), lambda i, j, k: (k, j)),   # weight (n_in,n_out)
            pl.BlockSpec((1, tn), lambda i, j, k: (0, j)),    # bias row
        ],
        out_specs=pl.BlockSpec((tb, tn), lambda i, j, k: (i, j)),
        compiler_params=pltpu.CompilerParams(
            dimension_semantics=("parallel", "parallel", "arbitrary"),
            vmem_limit_bytes=vmem_limit,
        ),
        cost_estimate=cost,
    )(x, w_p, b2d)

    out = out_p[:B, :n_out]
    return out.astype(data.dtype)


def vbp_linear(data, mu_w, bias, *, compute_dtype=jnp.bfloat16, **tile_kwargs):
    """One-off convenience wrapper.  For repeated calls on the same layer,
    hoist prepare_vbp_linear() and call vbp_linear_forward directly."""
    prepared = prepare_vbp_linear(mu_w, bias, compute_dtype=compute_dtype)
    return vbp_linear_forward(data, prepared, **tile_kwargs)


def init_vbp_linear_params(key, in_features, out_features):
    """Deterministic parameter init mirroring VBPLinear.reset_parameters."""
    k_mu, k_logsig = jax.random.split(key)
    stdv = 1.0 / math.sqrt(in_features)
    mu_w = stdv * jax.random.normal(k_mu, (out_features, in_features), jnp.float32)
    # logsig2_w ~ N(-9, 0.001); not used in forward, kept for fidelity.
    logsig2_w = -9.0 + 0.001 * jax.random.normal(
        k_logsig, (out_features, in_features), jnp.float32
    )
    bias = jnp.zeros((out_features,), jnp.float32)
    return mu_w, logsig2_w, bias
    # TODO(synk): KL() and var() are training/uncertainty-propagation paths,
    # not part of forward(); not implemented as kernels here.


if __name__ == "__main__":
    key = jax.random.PRNGKey(0)
    k1, k2, k3, k4 = jax.random.split(key, 4)

    # --- Test 1: small single-block layer, f32 compute, strict tolerance. ---
    B, n_in, n_out = 8, 32, 16
    data = jax.random.normal(k1, (B, n_in), jnp.float32)
    mu_w, logsig2_w, bias = init_vbp_linear_params(k2, n_in, n_out)

    prep = prepare_vbp_linear(mu_w, bias, compute_dtype=jnp.float32)
    out = jax.block_until_ready(vbp_linear_forward(data, prep))
    ref = data @ mu_w.T + bias
    assert out.shape == (B, n_out)
    assert jnp.allclose(out, ref, atol=1e-5, rtol=1e-5)

    # --- Test 2: ragged dims, multi-block (M,N,K) grid, default bf16 compute
    # with f32 accumulation (tolerance-gated deviation from f32 F.linear). ---
    B2, n_in2, n_out2 = 16, 320, 192
    data2 = jax.random.normal(k3, (B2, n_in2), jnp.float32)
    mu_w2, _, _ = init_vbp_linear_params(k4, n_in2, n_out2)
    bias2 = 0.1 * jax.random.normal(k4, (n_out2,), jnp.float32)

    prep2 = prepare_vbp_linear(mu_w2, bias2)  # prepared once, bf16 default
    out2 = jax.block_until_ready(
        vbp_linear_forward(data2, prep2, tb=16, tn=128, tk=128)
    )
    ref2 = data2 @ mu_w2.T + bias2
    assert out2.shape == (B2, n_out2)
    assert jnp.allclose(out2, ref2, atol=5e-2, rtol=5e-2)

    print("KERNEL_OK")
</pallas_src>

<mosaic_0001>
module attributes {stable_mosaic.version = 11 : i64} {
  func.func @_vbp_linear_kernel(%arg0: i32, %arg1: i32, %arg2: i32, %arg3: memref<8x128xf32, #tpu.memory_space<vmem>>, %arg4: memref<128x128xf32, #tpu.memory_space<vmem>>, %arg5: memref<1x128xf32, #tpu.memory_space<vmem>>, %arg6: memref<8x128xf32, #tpu.memory_space<vmem>>) attributes {dimension_semantics = [#tpu.dimension_semantics<parallel>, #tpu.dimension_semantics<parallel>, #tpu.dimension_semantics<arbitrary>], iteration_bounds = array<i64: 1, 1, 1>, scalar_prefetch = 0 : i64, scratch_operands = 0 : i64, tpu.core_type = #tpu.core_type<tc>, window_params = [{transform_indices = @transform_0, window_bounds = array<i64: 8, 128>}, {transform_indices = @transform_1, window_bounds = array<i64: 128, 128>}, {transform_indices = @transform_2, window_bounds = array<i64: 1, 128>}, {transform_indices = @transform_3, window_bounds = array<i64: 8, 128>}]} {
    %c0_i32 = arith.constant 0 : i32
    %0 = arith.cmpi eq, %arg2, %c0_i32 : i32
    %1 = arith.extui %0 : i1 to i32
    %c0_i32_0 = arith.constant 0 : i32
    %2 = arith.cmpi ne, %1, %c0_i32_0 : i32
    scf.if %2 {
      %cst_10 = arith.constant 0.000000e+00 : f32
      %12 = vector.broadcast %cst_10 : f32 to vector<8x128xf32>
      %c0_11 = arith.constant 0 : index
      %c0_12 = arith.constant 0 : index
      %13 = vector.load %arg6[%c0_11, %c0_12] : memref<8x128xf32, #tpu.memory_space<vmem>>, vector<8x128xf32>
      tpu.vector_store %arg6[%c0_11, %c0_12], %12 {strides = array<i32>} : memref<8x128xf32, #tpu.memory_space<vmem>>, vector<8x128xf32>,
    } else {
    }
    %c0 = arith.constant 0 : index
    %c0_1 = arith.constant 0 : index
    %3 = vector.load %arg6[%c0, %c0_1] : memref<8x128xf32, #tpu.memory_space<vmem>>, vector<8x128xf32>
    %c0_2 = arith.constant 0 : index
    %c0_3 = arith.constant 0 : index
    %4 = vector.load %arg3[%c0_2, %c0_3] : memref<8x128xf32, #tpu.memory_space<vmem>>, vector<8x128xf32>
    %c0_4 = arith.constant 0 : index
    %c0_5 = arith.constant 0 : index
    %5 = vector.load %arg4[%c0_4, %c0_5] : memref<128x128xf32, #tpu.memory_space<vmem>>, vector<128x128xf32>
    %cst = arith.constant dense<0.000000e+00> : vector<8x128xf32>
    %6 = tpu.matmul %4, %5, %cst {dimension_numbers = #tpu.dot_dimension_numbers<[1], [0], [0], [1], [0, 0, 1, 1], [], []>} : vector<8x128xf32>, vector<128x128xf32>, vector<8x128xf32> -> vector<8x128xf32>
    %7 = arith.addf %3, %6 : vector<8x128xf32>
    %c0_6 = arith.constant 0 : index
    %c0_7 = arith.constant 0 : index
    %8 = vector.load %arg6[%c0_6, %c0_7] : memref<8x128xf32, #tpu.memory_space<vmem>>, vector<8x128xf32>
    tpu.vector_store %arg6[%c0_6, %c0_7], %7 {strides = array<i32>} : memref<8x128xf32, #tpu.memory_space<vmem>>, vector<8x128xf32>,
    %c0_i32_8 = arith.constant 0 : i32
    %9 = arith.cmpi eq, %arg2, %c0_i32_8 : i32
    %10 = arith.extui %9 : i1 to i32
    %c0_i32_9 = arith.constant 0 : i32
    %11 = arith.cmpi ne, %10, %c0_i32_9 : i32
    scf.if %11 {
      %c0_10 = arith.constant 0 : index
      %c0_11 = arith.constant 0 : index
      %12 = vector.load %arg6[%c0_10, %c0_11] : memref<8x128xf32, #tpu.memory_space<vmem>>, vector<8x128xf32>
      %c0_12 = arith.constant 0 : index
      %c0_13 = arith.constant 0 : index
      %13 = vector.load %arg5[%c0_12, %c0_13] : memref<1x128xf32, #tpu.memory_space<vmem>>, vector<1x128xf32>
      %14 = vector.broadcast %13 : vector<1x128xf32> to vector<8x128xf32>
      %15 = arith.addf %12, %14 : vector<8x128xf32>
      %c0_14 = arith.constant 0 : index
      %c0_15 = arith.constant 0 : index
      %16 = vector.load %arg6[%c0_14, %c0_15] : memref<8x128xf32, #tpu.memory_space<vmem>>, vector<8x128xf32>
      tpu.vector_store %arg6[%c0_14, %c0_15], %15 {strides = array<i32>} : memref<8x128xf32, #tpu.memory_space<vmem>>, vector<8x128xf32>,
    } else {
    }
    return
  }
  func.func @transform_0(%arg0: i32, %arg1: i32, %arg2: i32) -> (i32, i32) {
    %c0_i32 = arith.constant 0 : i32
    return %arg0, %arg2 : i32, i32
  }
  func.func @transform_1(%arg0: i32, %arg1: i32, %arg2: i32) -> (i32, i32) {
    %c0_i32 = arith.constant 0 : i32
    return %arg2, %arg1 : i32, i32
  }
  func.func @transform_2(%arg0: i32, %arg1: i32, %arg2: i32) -> (i32, i32) {
    %c0_i32 = arith.constant 0 : i32
    %c0_i32_0 = arith.constant 0 : i32
    return %c0_i32, %arg1 : i32, i32
  }
  func.func @transform_3(%arg0: i32, %arg1: i32, %arg2: i32) -> (i32, i32) {
    %c0_i32 = arith.constant 0 : i32
    return %arg0, %arg1 : i32, i32
  }
}

</mosaic_0001>

<llo_original>
// kernel: tpu_custom_call.1
$region0: #{tpu_custom_call.1}
  #allocation0 [shape = 'u32[]', space=smem, size = 0x4, offset = 0x4, fixed_abs, tag = 'smem constant byte address 0x4 - core index']
  #allocation1 [shape = 'u32[144,128]{1,0:T(1,128)}', space=vmem, size = 0x12000, scoped, tag = 'internal scratch']
  %s0 = inlined_call_operand.hbm [shape: f32[8,128], index: 0, kind: input, shape index: {}]
  %s1 = inlined_call_operand.hbm [shape: f32[128,128], index: 1, kind: input, shape index: {}]
  %s2 = inlined_call_operand.vmem [shape: f32[1,128], index: 2, kind: input, shape index: {}]
  %s3 = inlined_call_operand.hbm [shape: f32[8,128], index: 3, kind: output, shape index: {}]
  %s4 = sld [smem:[#allocation0]]
  $region38: #{tpu_custom_call.1} parent=0
    _
  %s6 = ssub.s32 1, %s4
  %s7 = scalar_select 0, %s6, %s4
  $region1: #{tpu_custom_call.1} parent=0
    #allocation2 [shape = 'u8[4096]{0}', space=vmem, size = 0x1000, scoped, tag = 'input window, operand 0, single buffered']
    #allocation3 [shape = 's32[1]{0}', space=sflag, size = 0x4, scoped, tag = 'scoped memory for tpu_custom_call.1']
    #allocation4 [shape = 's32[1]{0}', space=sflag, size = 0x4, scoped, tag = 'scoped memory for tpu_custom_call.1']
    #allocation5 [shape = 'u8[65536]{0}', space=vmem, size = 0x10000, scoped, tag = 'input window, operand 1, single buffered']
    #allocation6 [shape = 's32[1]{0}', space=sflag, size = 0x4, scoped, tag = 'scoped memory for tpu_custom_call.1']
    #allocation7 [shape = 'u8[4096]{0}', space=vmem, size = 0x1000, scoped, tag = 'output window, operand 0, single buffered']
    %8 = vsyncpa [#allocation3], 0
    %9 = vsyncpa [#allocation6], 0
    %10 = vsyncpa [#allocation4], 0
    // Predicated region
    $region2: #{tpu_custom_call.1} parent=1 // pred_check
      _
    $region3: #{tpu_custom_call.1} parent=1 // pred_check_branch
      %12 = sbr.rel (0) target = $region5
    $region4: #{tpu_custom_call.1} parent=1 // pred_region
      %s14 = ssub.s32 128, 128
      %15 = vsyncadd [#allocation3], %s14
      %s17 = sshll.u32 [#allocation2], 4
      %s18 = int_to_ptr.vmem [resolvable:$true] %s17
      %20 = dma.hbm_to_vmem [thread:$0]  %s0, 128, %s18, [#allocation3]
    $region5: #{tpu_custom_call.1} parent=1 // pred_fallthru
      _
    // Predicated region
    $region6: #{tpu_custom_call.1} parent=1 // pred_check
      _
    $region7: #{tpu_custom_call.1} parent=1 // pred_check_branch
      %22 = sbr.rel (0) target = $region9
    $region8: #{tpu_custom_call.1} parent=1 // pred_region
      %s24 = ssub.s32 2048, 2048
      %25 = vsyncadd [#allocation6], %s24
      %s26 = sshll.u32 [#allocation5], 4
      %s27 = int_to_ptr.vmem [resolvable:$true] %s26
      %32 = dma.hbm_to_vmem [thread:$0]  %s1, 2048, %s27, [#allocation6], 128, 128, 8
    $region9: #{tpu_custom_call.1} parent=1 // pred_fallthru
      _
    // Predicated region
    $region10: #{tpu_custom_call.1} parent=1 // pred_check
      _
    $region11: #{tpu_custom_call.1} parent=1 // pred_check_branch
      %34 = sbr.rel (0) target = $region13
    $region12: #{tpu_custom_call.1} parent=1 // pred_region
      _
    $region13: #{tpu_custom_call.1} parent=1 // pred_fallthru
      _
    // Predicated region
    $region14: #{tpu_custom_call.1} parent=1 // pred_check
      _
    $region15: #{tpu_custom_call.1} parent=1 // pred_check_branch
      %36 = sbr.rel (0) target = $region17
    $region16: #{tpu_custom_call.1} parent=1 // pred_region
      %37 = dma.done [#allocation3], 128
    $region17: #{tpu_custom_call.1} parent=1 // pred_fallthru
      _
    // Predicated region
    $region18: #{tpu_custom_call.1} parent=1 // pred_check
      _
    $region19: #{tpu_custom_call.1} parent=1 // pred_check_branch
      %39 = sbr.rel (0) target = $region21
    $region20: #{tpu_custom_call.1} parent=1 // pred_region
      %40 = dma.done [#allocation6], 2048
    $region21: #{tpu_custom_call.1} parent=1 // pred_fallthru
      _
    %p41 = scmp.eq.s32.totalorder 0, 0
    // Predicated region
    $region22: #{tpu_custom_call.1} parent=1 // pred_check
      %p42 = pneg %p41
    $region23: #{tpu_custom_call.1} parent=1 // pred_check_branch
      %44 = sbr.rel (%p42) target = $region25
    $region24: #{tpu_custom_call.1} parent=1 // pred_region
      %45 = vst [vmem:[#allocation7] sm:$0xff] 0.0
    $region25: #{tpu_custom_call.1} parent=1 // pred_fallthru
      _
    %v46 = vld [vmem:[#allocation7] sm:$0xff]
    %v47 = vld [vmem:[#allocation2] sm:$0xff]
    %v48 = vld [vmem:[#allocation5] sm:$0xff]
    %v49 = vld [vmem:[#allocation5 + $0x8] sm:$0xff]
    %v50 = vld [vmem:[#allocation5 + $0x10] sm:$0xff]
    %v51 = vld [vmem:[#allocation5 + $0x18] sm:$0xff]
    %v52 = vld [vmem:[#allocation5 + $0x20] sm:$0xff]
    %v53 = vld [vmem:[#allocation5 + $0x28] sm:$0xff]
    %v54 = vld [vmem:[#allocation5 + $0x30] sm:$0xff]
    %v55 = vld [vmem:[#allocation5 + $0x38] sm:$0xff]
    %v56 = vld [vmem:[#allocation5 + $0x40] sm:$0xff]
    %v57 = vld [vmem:[#allocation5 + $0x48] sm:$0xff]
    %v58 = vld [vmem:[#allocation5 + $0x50] sm:$0xff]
    %v59 = vld [vmem:[#allocation5 + $0x58] sm:$0xff]
    %v60 = vld [vmem:[#allocation5 + $0x60] sm:$0xff]
    %v61 = vld [vmem:[#allocation5 + $0x68] sm:$0xff]
    %v62 = vld [vmem:[#allocation5 + $0x70] sm:$0xff]
    %v63 = vld [vmem:[#allocation5 + $0x78] sm:$0xff]
    %64 = vmatprep.subr.mxu0 0.0
    %65 = vmatpush1.msra.mxu0 %v48
    %66 = vmatprep.subr.mxu0 0.0
    %67 = vmatpush1.msra.mxu0 %v49
    %68 = vmatprep.subr.mxu0 0.0
    %69 = vmatpush1.msra.mxu0 %v50
    %70 = vmatprep.subr.mxu0 0.0
    %71 = vmatpush1.msra.mxu0 %v51
    %72 = vmatprep.subr.mxu0 0.0
    %73 = vmatpush1.msra.mxu0 %v52
    %74 = vmatprep.subr.mxu0 0.0
    %75 = vmatpush1.msra.mxu0 %v53
    %76 = vmatprep.subr.mxu0 0.0
    %77 = vmatpush1.msra.mxu0 %v54
    %78 = vmatprep.subr.mxu0 0.0
    %79 = vmatpush1.msra.mxu0 %v55
    %80 = vmatprep.subr.mxu0 0.0
    %81 = vmatpush1.msra.mxu0 %v56
    %82 = vmatprep.subr.mxu0 0.0
    %83 = vmatpush1.msra.mxu0 %v57
    %84 = vmatprep.subr.mxu0 0.0
    %85 = vmatpush1.msra.mxu0 %v58
    %86 = vmatprep.subr.mxu0 0.0
    %87 = vmatpush1.msra.mxu0 %v59
    %88 = vmatprep.subr.mxu0 0.0
    %89 = vmatpush1.msra.mxu0 %v60
    %90 = vmatprep.subr.mxu0 0.0
    %91 = vmatpush1.msra.mxu0 %v61
    %92 = vmatprep.subr.mxu0 0.0
    %93 = vmatpush1.msra.mxu0 %v62
    %94 = vmatprep.subr.mxu0 0.0
    %95 = vmatpush1.msra.mxu0 %v63
    %96 = vmatprep.subr.mxu0 0.0
    %97 = vmatpush1.msra.mxu0 0.0
    %98 = vmatprep.subr.mxu0 0.0
    %99 = vmatpush1.msra.mxu0 0.0
    %100 = vmatprep.subr.mxu0 0.0
    %101 = vmatpush1.msra.mxu0 0.0
    %102 = vmatprep.subr.mxu0 0.0
    %103 = vmatpush1.msra.mxu0 0.0
    %104 = vmatprep.subr.mxu0 0.0
    %105 = vmatpush1.msra.mxu0 0.0
    %106 = vmatprep.subr.mxu0 0.0
    %107 = vmatpush1.msra.mxu0 0.0
    %108 = vmatprep.subr.mxu0 0.0
    %109 = vmatpush1.msra.mxu0 0.0
    %110 = vmatprep.subr.mxu0 0.0
    %111 = vmatpush1.msra.mxu0 0.0
    %112 = vmatprep.subr.mxu0 0.0
    %113 = vmatpush1.msra.mxu0 0.0
    %114 = vmatprep.subr.mxu0 0.0
    %115 = vmatpush1.msra.mxu0 0.0
    %116 = vmatprep.subr.mxu0 0.0
    %117 = vmatpush1.msra.mxu0 0.0
    %118 = vmatprep.subr.mxu0 0.0
    %119 = vmatpush1.msra.mxu0 0.0
    %120 = vmatprep.subr.mxu0 0.0
    %121 = vmatpush1.msra.mxu0 0.0
    %122 = vmatprep.subr.mxu0 0.0
    %123 = vmatpush1.msra.mxu0 0.0
    %124 = vmatprep.subr.mxu0 0.0
    %125 = vmatpush1.msra.mxu0 0.0
    %126 = vmatprep.subr.mxu0 0.0
    %127 = vmatpush1.msra.mxu0 0.0
    %128 = vmatprep.mubr.f32.mxu0 0.0
    %129 = vmatmul.mubr.f32.gmra.mrb[0].mxu0 %v47
    %v130 = vpop.f32.mrb[0].mxu0
    %v131 = vadd.f32 0.0, %v130
    %v132 = vpop.f32.mrb[0].mxu0
    %133 = vdwg.mxu0
    %v134 = vadd.f32 %v46, %v131
    %135 = vst [vmem:[#allocation7] sm:$0xff] %v134
    // Predicated region
    $region26: #{tpu_custom_call.1} parent=1 // pred_check
      %p136 = pneg %p41
    $region27: #{tpu_custom_call.1} parent=1 // pred_check_branch
      %138 = sbr.rel (%p136) target = $region29
    $region28: #{tpu_custom_call.1} parent=1 // pred_region
      %v139 = vld [vmem:[#allocation7] sm:$0xff]
      %v140 = vld [vmem:[%s2] sm:$0x1]
      %v142 = vlaneseq
      %v143 = vshrl.u32 %v142, 7
      %v144 = vsub.s32 0, %v143
      %v145 = vrot.slane %v140, %v144
      %v147 = vadd.f32 %v139, %v145
      %148 = vst [vmem:[#allocation7] sm:$0xff] %v147
    $region29: #{tpu_custom_call.1} parent=1 // pred_fallthru
      _
    // Predicated region
    $region30: #{tpu_custom_call.1} parent=1 // pred_check
      _
    $region31: #{tpu_custom_call.1} parent=1 // pred_check_branch
      %150 = sbr.rel (0) target = $region33
    $region32: #{tpu_custom_call.1} parent=1 // pred_region
      %s152 = ssub.s32 128, 128
      %153 = vsyncadd [#allocation4], %s152
      %s155 = sshll.u32 [#allocation7], 4
      %s156 = int_to_ptr.vmem [resolvable:$true] %s155
      %158 = dma.vmem_to_hbm [thread:$0]  %s156, 128, %s3, [#allocation4]
    $region33: #{tpu_custom_call.1} parent=1 // pred_fallthru
      _
    // Predicated region
    $region34: #{tpu_custom_call.1} parent=1 // pred_check
      _
    $region35: #{tpu_custom_call.1} parent=1 // pred_check_branch
      %160 = sbr.rel (0) target = $region37
    $region36: #{tpu_custom_call.1} parent=1 // pred_region
      %161 = dma.done [#allocation4], 128
    $region37: #{tpu_custom_call.1} parent=1 // pred_fallthru
      _
    %162 = vsyncpa [#allocation3], 1
    %163 = vsyncpa [#allocation6], 1
    %164 = vsyncpa [#allocation4], 1

</llo_original>
